<compile_context>
chip_gen: v7x
topology: tpu7x:2x2x1
jax: 0.10.0
libtpu: 0.0.40
codegen_flags: <defaults>
</compile_context>

<pallas_src>
import jax
import jax.numpy as jnp
from jax.experimental import pallas as pl
from jax.experimental.pallas import tpu as pltpu


def _round_up(x, m):
    return ((x + m - 1) // m) * m


def _vmem_capacity_bytes():
    """Physical VMEM per TensorCore (128 MiB v5e/v6e, 64 MiB v7x)."""
    try:
        cap = pltpu.get_tpu_info().vmem_capacity_bytes
        if cap:
            return int(cap)
    except Exception:
        pass
    return 64 * 1024 * 1024  # conservative fallback (v7x per-core VMEM)


def _estimate_vmem_bytes(tile_b, num_users, num_items, k, table_itemsize):
    """Per-grid-step VMEM footprint of the one-hot gather kernel (padded to
    the (8, 128) layout), including the resident tables and the
    double-buffered pipelined index/output tiles."""
    u_sub = _round_up(num_users, 8)      # one-hot sublane dim
    i_sub = _round_up(num_items, 8)
    k_sub = _round_up(k, 8)
    u_lane = _round_up(num_users, 128)   # resident transposed-table lane dim
    i_lane = _round_up(num_items, 128)
    # Resident transposed tables (single copy: unblocked VMEM specs).
    tables = k_sub * (u_lane + i_lane) * table_itemsize
    # One-hot matrices [U, TILE_B] + [I, TILE_B] in the table dtype.
    onehots = (u_sub + i_sub) * tile_b * table_itemsize
    # Shared int32 iota [max(U, I), TILE_B] (sliced for both comparisons).
    iota = max(u_sub, i_sub) * tile_b * 4
    # Gathered embeddings [K, TILE_B] x2 (f32 accumulators) + logits row.
    gathered = (2 * k_sub + 8) * tile_b * 4
    # Double-buffered pipelined tiles: [2, TILE_B] int32 indices and
    # [1, TILE_B] f32 output, both padded to 8 sublanes.
    pipelined = 2 * (8 * tile_b * 4 + 8 * tile_b * 4)
    return tables + onehots + iota + gathered + pipelined


def _pick_tile_b(batch, num_users, num_items, k, table_itemsize, budget_bytes):
    """Largest lane-dense batch tile (multiple of 128, no hard upper cap
    beyond the batch) whose full footprint fits the generation-aware VMEM
    budget."""
    b_pad128 = _round_up(batch, 128)
    if _estimate_vmem_bytes(128, num_users, num_items, k,
                            table_itemsize) > budget_bytes:
        # TODO(synk): fall back to the scalar-prefetched HBM DMA row-gather
        # path here instead of failing.
        raise ValueError(
            "MF one-hot gather kernel does not fit VMEM even at TILE_B=128 "
            f"(num_users={num_users}, num_items={num_items}); the embedding "
            "tables are too large to keep VMEM-resident."
        )
    tile = 128
    while tile < b_pad128:
        nxt = tile * 2
        if _estimate_vmem_bytes(nxt, num_users, num_items, k,
                                table_itemsize) > budget_bytes:
            break
        tile = nxt
    return min(tile, b_pad128)


def mf_forward_kernel(x_ref, wt_ref, ht_ref, out_ref):
    # x_ref:  [2, TILE_B] int32 (row 0 = user idx, row 1 = item idx), lane-dense.
    # wt_ref: [K, num_users]  W^T, whole table VMEM-resident (unblocked spec).
    # ht_ref: [K, num_items]  H^T, whole table VMEM-resident (unblocked spec).
    # out_ref:[1, TILE_B] f32, lane-dense output tile.
    num_users = wt_ref.shape[1]
    num_items = ht_ref.shape[1]
    tb = x_ref.shape[1]
    table_dtype = wt_ref.dtype

    user_idx = x_ref[0:1, :]  # [1, TB] int32
    item_idx = x_ref[1:2, :]  # [1, TB] int32

    # One shared iota, sliced for both one-hot builds (saves min(U,I)*TB*4 B
    # of int32 temporaries vs two separately materialized iotas).
    iota = jax.lax.broadcasted_iota(
        jnp.int32, (max(num_users, num_items), tb), 0)
    onehot_u = (iota[:num_users, :] == user_idx).astype(table_dtype)  # [U, TB]
    onehot_i = (iota[:num_items, :] == item_idx).astype(table_dtype)  # [I, TB]

    # Gather as MXU matmuls: [K, U] @ [U, TB] -> [K, TB]; batch stays on lanes.
    u_embt = jnp.dot(wt_ref[...], onehot_u, preferred_element_type=jnp.float32)
    v_embt = jnp.dot(ht_ref[...], onehot_i, preferred_element_type=jnp.float32)

    # Reduce over the tiny embedding dim K (sublane axis) -> [1, TB].
    logits = jnp.sum(u_embt * v_embt, axis=0, keepdims=True)

    # Exact sigmoid: exp + exact reciprocal both run on the EUP slot.
    out_ref[...] = pl.reciprocal(1.0 + jnp.exp(-logits), approx=False)


def mf_forward_transposed(x, w_t, h_t):
    """Hot path.  x: [B, 2] int, w_t: [K, num_users], h_t: [K, num_items]
    -> sigmoid(<W[u], H[i]>) as [B] float32.

    Store parameters transposed ([K, U] / [K, I], optionally bfloat16) at
    parameter-load time and call this directly to avoid a per-call full-table
    transpose through HBM."""
    B = x.shape[0]
    k, num_users = w_t.shape
    num_items = h_t.shape[1]

    cap = _vmem_capacity_bytes()
    vmem_limit = int(cap * 0.85)    # leave headroom for compiler scratch
    tile_budget = int(cap * 0.70)   # budget used for the tile-size choice

    table_itemsize = jnp.dtype(w_t.dtype).itemsize
    tile_b = _pick_tile_b(B, num_users, num_items, k, table_itemsize,
                          tile_budget)
    b_pad = _round_up(B, tile_b)

    # Lane-dense index layout [2, B_pad]; padded slots index row 0 (valid,
    # their outputs are sliced off below).
    x_t = jnp.zeros((2, b_pad), jnp.int32).at[:, :B].set(x.T.astype(jnp.int32))

    grid = (b_pad // tile_b,)
    out = pl.pallas_call(
        mf_forward_kernel,
        out_shape=jax.ShapeDtypeStruct((1, b_pad), jnp.float32),
        grid=grid,
        in_specs=[
            # Pipelined lane-dense index tile.
            pl.BlockSpec((2, tile_b), lambda i: (0, i)),
            # Whole transposed tables, VMEM-resident for the entire call:
            # unblocked spec => single copy, no per-step re-DMA / 2x buffers.
            pl.BlockSpec(memory_space=pltpu.MemorySpace.VMEM),
            pl.BlockSpec(memory_space=pltpu.MemorySpace.VMEM),
        ],
        out_specs=pl.BlockSpec((1, tile_b), lambda i: (0, i)),
        compiler_params=pltpu.CompilerParams(
            # "parallel": batch tiles may shard across the two TensorCores on
            # v7x; harmless single-TC on v5e/v6e.
            dimension_semantics=("parallel",),
            vmem_limit_bytes=vmem_limit,
        ),
    )(x_t, w_t, h_t)
    return out[0, :B]


def mf_forward(x, W, H, use_bf16_tables=False):
    """Convenience wrapper matching MF.forward: x [B,2], W [U,K], H [I,K]."""
    w_t = W.T  # [K, U]  (prefer doing this once at parameter-load time)
    h_t = H.T  # [K, I]
    if use_bf16_tables:
        # Halves resident-table VMEM and uses the native bf16 MXU path;
        # one-hots follow the table dtype (0/1 exact), accumulation stays f32.
        w_t = w_t.astype(jnp.bfloat16)
        h_t = h_t.astype(jnp.bfloat16)
    return mf_forward_transposed(x, w_t, h_t)


def mf_forward_ref(x, W, H):
    """Pure-JAX reference for correctness check."""
    u = W[x[:, 0]]
    v = H[x[:, 1]]
    return jax.nn.sigmoid(jnp.sum(u * v, axis=1))


if __name__ == "__main__":
    num_users = 16
    num_items = 32
    embedding_k = 4
    batch = 8

    key = jax.random.PRNGKey(0)
    kw, kh, ku, ki = jax.random.split(key, 4)

    # nn.Embedding default init is N(0, 1).
    W = jax.random.normal(kw, (num_users, embedding_k), dtype=jnp.float32)
    H = jax.random.normal(kh, (num_items, embedding_k), dtype=jnp.float32)

    user_idx = jax.random.randint(ku, (batch,), 0, num_users, dtype=jnp.int32)
    item_idx = jax.random.randint(ki, (batch,), 0, num_items, dtype=jnp.int32)
    x = jnp.stack([user_idx, item_idx], axis=1)  # [B, 2] int32

    # Pre-transpose the tables once (parameter-load time), as recommended for
    # the hot path, then call the transposed entry point.
    w_t = jnp.asarray(W.T)  # [K, U]
    h_t = jnp.asarray(H.T)  # [K, I]

    out = jax.block_until_ready(mf_forward_transposed(x, w_t, h_t))
    ref = mf_forward_ref(x, W, H)

    assert out.shape == (batch,)
    # Exact (non-approx) sigmoid in the kernel -> tight tolerance vs reference.
    assert jnp.allclose(out, ref, atol=1e-5, rtol=1e-5), (out, ref)

    print("KERNEL_OK")
</pallas_src>

<mosaic_0001>
module attributes {stable_mosaic.version = 11 : i64} {
  func.func @mf_forward_kernel(%arg0: i32, %arg1: memref<2x128xi32, #tpu.memory_space<vmem>>, %arg2: memref<4x16xf32, #tpu.memory_space<vmem>>, %arg3: memref<4x32xf32, #tpu.memory_space<vmem>>, %arg4: memref<1x128xf32, #tpu.memory_space<vmem>>) attributes {dimension_semantics = [#tpu.dimension_semantics<parallel>], iteration_bounds = array<i64: 1>, scalar_prefetch = 0 : i64, scratch_operands = 0 : i64, tpu.core_type = #tpu.core_type<tc>, window_params = [{transform_indices = @transform_0, window_bounds = array<i64: 2, 128>}, {pipeline_mode = #tpu.pipeline_mode<synchronous>, transform_indices = @transform_1, window_bounds = array<i64: 4, 16>}, {pipeline_mode = #tpu.pipeline_mode<synchronous>, transform_indices = @transform_2, window_bounds = array<i64: 4, 32>}, {transform_indices = @transform_3, window_bounds = array<i64: 1, 128>}]} {
    %c0 = arith.constant 0 : index
    %c0_0 = arith.constant 0 : index
    %0 = vector.load %arg1[%c0, %c0_0] : memref<2x128xi32, #tpu.memory_space<vmem>>, vector<1x128xi32>
    %c1 = arith.constant 1 : index
    %c0_1 = arith.constant 0 : index
    %1 = vector.load %arg1[%c1, %c0_1] : memref<2x128xi32, #tpu.memory_space<vmem>>, vector<1x128xi32>
    %2 = tpu.iota {dimensions = array<i32: 0>} : vector<32x128xi32>
    %3 = vector.extract_strided_slice %2 {offsets = [0, 0], sizes = [16, 128], strides = [1, 1]} : vector<32x128xi32> to vector<16x128xi32>
    %4 = vector.broadcast %0 : vector<1x128xi32> to vector<16x128xi32>
    %5 = arith.cmpi eq, %3, %4 : vector<16x128xi32>
    %6 = arith.extui %5 : vector<16x128xi1> to vector<16x128xi32>
    %7 = arith.sitofp %6 : vector<16x128xi32> to vector<16x128xf32>
    %8 = vector.broadcast %1 : vector<1x128xi32> to vector<32x128xi32>
    %9 = arith.cmpi eq, %2, %8 : vector<32x128xi32>
    %10 = arith.extui %9 : vector<32x128xi1> to vector<32x128xi32>
    %11 = arith.sitofp %10 : vector<32x128xi32> to vector<32x128xf32>
    %c0_2 = arith.constant 0 : index
    %c0_3 = arith.constant 0 : index
    %12 = vector.load %arg2[%c0_2, %c0_3] : memref<4x16xf32, #tpu.memory_space<vmem>>, vector<4x16xf32>
    %cst = arith.constant dense<0.000000e+00> : vector<4x128xf32>
    %13 = tpu.matmul %12, %7, %cst {dimension_numbers = #tpu.dot_dimension_numbers<[1], [0], [0], [1], [0, 0, 1, 1], [], []>} : vector<4x16xf32>, vector<16x128xf32>, vector<4x128xf32> -> vector<4x128xf32>
    %c0_4 = arith.constant 0 : index
    %c0_5 = arith.constant 0 : index
    %14 = vector.load %arg3[%c0_4, %c0_5] : memref<4x32xf32, #tpu.memory_space<vmem>>, vector<4x32xf32>
    %cst_6 = arith.constant dense<0.000000e+00> : vector<4x128xf32>
    %15 = tpu.matmul %14, %11, %cst_6 {dimension_numbers = #tpu.dot_dimension_numbers<[1], [0], [0], [1], [0, 0, 1, 1], [], []>} : vector<4x32xf32>, vector<32x128xf32>, vector<4x128xf32> -> vector<4x128xf32>
    %16 = arith.mulf %13, %15 : vector<4x128xf32>
    %cst_7 = arith.constant dense<0.000000e+00> : vector<128xf32>
    %17 = vector.multi_reduction <add>, %16, %cst_7 [0] : vector<4x128xf32> to vector<128xf32>
    %18 = vector.shape_cast %17 : vector<128xf32> to vector<1x128xf32>
    %cst_8 = arith.constant 0.000000e+00 : f32
    %19 = vector.broadcast %cst_8 : f32 to vector<1x128xf32>
    %20 = arith.subf %19, %18 : vector<1x128xf32>
    %21 = math.exp %20 : vector<1x128xf32>
    %cst_9 = arith.constant 1.000000e+00 : f32
    %22 = vector.broadcast %cst_9 : f32 to vector<1x128xf32>
    %23 = arith.addf %22, %21 : vector<1x128xf32>
    %24 = tpu.reciprocal %23 : vector<1x128xf32> -> vector<1x128xf32>
    %c0_10 = arith.constant 0 : index
    %c0_11 = arith.constant 0 : index
    %25 = vector.load %arg4[%c0_10, %c0_11] : memref<1x128xf32, #tpu.memory_space<vmem>>, vector<1x128xf32>
    tpu.vector_store %arg4[%c0_10, %c0_11], %24 {strides = array<i32>} : memref<1x128xf32, #tpu.memory_space<vmem>>, vector<1x128xf32>,
    return
  }
  func.func @transform_0(%arg0: i32) -> (i32, i32) {
    %c0_i32 = arith.constant 0 : i32
    %c0_i32_0 = arith.constant 0 : i32
    return %c0_i32, %arg0 : i32, i32
  }
  func.func @transform_1(%arg0: i32) -> (i32, i32) {
    %c0_i32 = arith.constant 0 : i32
    %c0_i32_0 = arith.constant 0 : i32
    %c0_i32_1 = arith.constant 0 : i32
    return %c0_i32, %c0_i32_0 : i32, i32
  }
  func.func @transform_2(%arg0: i32) -> (i32, i32) {
    %c0_i32 = arith.constant 0 : i32
    %c0_i32_0 = arith.constant 0 : i32
    %c0_i32_1 = arith.constant 0 : i32
    return %c0_i32, %c0_i32_0 : i32, i32
  }
  func.func @transform_3(%arg0: i32) -> (i32, i32) {
    %c0_i32 = arith.constant 0 : i32
    %c0_i32_0 = arith.constant 0 : i32
    return %c0_i32, %arg0 : i32, i32
  }
}

</mosaic_0001>

<llo_original>
// kernel: tpu_custom_call.1
$region0: #{tpu_custom_call.1}
  #allocation0 [shape = 'u32[]', space=smem, size = 0x4, offset = 0x4, fixed_abs, tag = 'smem constant byte address 0x4 - core index']
  #allocation1 [shape = 'u32[144,128]{1,0:T(1,128)}', space=vmem, size = 0x12000, scoped, tag = 'internal scratch']
  %s0 = inlined_call_operand.hbm [shape: s32[2,128], index: 0, kind: input, shape index: {}]
  %s1 = inlined_call_operand.hbm [shape: f32[4,16], index: 1, kind: input, shape index: {}]
  %s2 = inlined_call_operand.vmem [shape: f32[4,32], index: 2, kind: input, shape index: {}]
  %s3 = inlined_call_operand.hbm [shape: f32[1,128], index: 3, kind: output, shape index: {}]
  %s4 = sld [smem:[#allocation0]]
  $region30: #{tpu_custom_call.1} parent=0
    _
  %s6 = ssub.s32 1, %s4
  %s7 = scalar_select 0, %s6, %s4
  $region1: #{tpu_custom_call.1} parent=0
    #allocation2 [shape = 'u8[1024]{0}', space=vmem, size = 0x400, scoped, tag = 'input window, operand 0, single buffered']
    #allocation3 [shape = 's32[1]{0}', space=sflag, size = 0x4, scoped, tag = 'scoped memory for tpu_custom_call.1']
    #allocation4 [shape = 's32[1]{0}', space=sflag, size = 0x4, scoped, tag = 'scoped memory for tpu_custom_call.1']
    #allocation5 [shape = 'u8[2048]{0}', space=vmem, size = 0x800, scoped, tag = 'input window, operand 1, single buffered']
    #allocation6 [shape = 's32[1]{0}', space=sflag, size = 0x4, scoped, tag = 'scoped memory for tpu_custom_call.1']
    #allocation7 [shape = 'u8[512]{0}', space=vmem, size = 0x400, scoped, tag = 'output window, operand 0, single buffered']
    %8 = vsyncpa [#allocation3], 0
    %9 = vsyncpa [#allocation6], 0
    %10 = vsyncpa [#allocation4], 0
    // Predicated region
    $region2: #{tpu_custom_call.1} parent=1 // pred_check
      _
    $region3: #{tpu_custom_call.1} parent=1 // pred_check_branch
      %12 = sbr.rel (0) target = $region5
    $region4: #{tpu_custom_call.1} parent=1 // pred_region
      %s14 = ssub.s32 32, 32
      %15 = vsyncadd [#allocation3], %s14
      %s17 = sshll.u32 [#allocation2], 4
      %s18 = int_to_ptr.vmem [resolvable:$true] %s17
      %20 = dma.hbm_to_vmem [thread:$0]  %s0, 32, %s18, [#allocation3]
    $region5: #{tpu_custom_call.1} parent=1 // pred_fallthru
      _
    // Predicated region
    $region6: #{tpu_custom_call.1} parent=1 // pred_check
      _
    $region7: #{tpu_custom_call.1} parent=1 // pred_check_branch
      %22 = sbr.rel (0) target = $region9
    $region8: #{tpu_custom_call.1} parent=1 // pred_region
      %s24 = ssub.s32 64, 64
      %25 = vsyncadd [#allocation6], %s24
      %s27 = sshll.u32 [#allocation5], 4
      %s28 = int_to_ptr.vmem [resolvable:$true] %s27
      %30 = dma.hbm_to_vmem [thread:$0]  %s1, 64, %s28, [#allocation6]
    $region9: #{tpu_custom_call.1} parent=1 // pred_fallthru
      _
    // Predicated region
    $region10: #{tpu_custom_call.1} parent=1 // pred_check
      _
    $region11: #{tpu_custom_call.1} parent=1 // pred_check_branch
      %32 = sbr.rel (0) target = $region13
    $region12: #{tpu_custom_call.1} parent=1 // pred_region
      _
    $region13: #{tpu_custom_call.1} parent=1 // pred_fallthru
      _
    // Predicated region
    $region14: #{tpu_custom_call.1} parent=1 // pred_check
      _
    $region15: #{tpu_custom_call.1} parent=1 // pred_check_branch
      %34 = sbr.rel (0) target = $region17
    $region16: #{tpu_custom_call.1} parent=1 // pred_region
      %35 = dma.done [#allocation3], 32
    $region17: #{tpu_custom_call.1} parent=1 // pred_fallthru
      _
    // Predicated region
    $region18: #{tpu_custom_call.1} parent=1 // pred_check
      _
    $region19: #{tpu_custom_call.1} parent=1 // pred_check_branch
      %37 = sbr.rel (0) target = $region21
    $region20: #{tpu_custom_call.1} parent=1 // pred_region
      %38 = dma.done [#allocation6], 64
    $region21: #{tpu_custom_call.1} parent=1 // pred_fallthru
      _
    %v39 = vld [vmem:[#allocation2] sm:$0x1]
    %v40 = vld [vmem:[#allocation2 + $0x1] sm:$0x1]
    %v41 = vlaneseq
    %v42 = vshrl.u32 %v41, 7
    %v43 = vadd.s32 %v42, 8
    %v44 = vadd.s32 %v42, 16
    %v45 = vadd.s32 %v42, 24
    %v46 = vlaneseq
    %v47 = vshrl.u32 %v46, 7
    %v48 = vsub.s32 0, %v47
    %v49 = vrot.slane %v39, %v48
    %vm50 = vcmp.eq.s32.totalorder %v42, %v49
    %vm51 = vcmp.eq.s32.totalorder %v43, %v49
    %v52 = vsel %vm50, 1, 0
    %v53 = vsel %vm51, 1, 0
    %v54 = vcvt.s32.f32 %v52
    %v55 = vcvt.s32.f32 %v53
    %v56 = vlaneseq
    %v57 = vshrl.u32 %v56, 7
    %v58 = vsub.s32 0, %v57
    %v59 = vrot.slane %v40, %v58
    %vm60 = vcmp.eq.s32.totalorder %v42, %v59
    %vm61 = vcmp.eq.s32.totalorder %v43, %v59
    %vm62 = vcmp.eq.s32.totalorder %v44, %v59
    %vm63 = vcmp.eq.s32.totalorder %v45, %v59
    %v64 = vsel %vm60, 1, 0
    %v65 = vsel %vm61, 1, 0
    %v66 = vsel %vm62, 1, 0
    %v67 = vsel %vm63, 1, 0
    %v68 = vcvt.s32.f32 %v64
    %v69 = vcvt.s32.f32 %v65
    %v70 = vcvt.s32.f32 %v66
    %v71 = vcvt.s32.f32 %v67
    %v72 = vld [vmem:[#allocation5] sm:$0xf]
    %vm73 = vcmask 130048
    %v75 = vsel %vm73, %v72, 0
    %77 = vmatprep.subr.mxu0 0.0
    %78 = vmatpush1.msra.mxu0 %v54
    %79 = vmatprep.subr.mxu0 0.0
    %80 = vmatpush1.msra.mxu0 %v55
    %81 = vmatprep.subr.mxu0 0.0
    %82 = vmatpush1.msra.mxu0 0.0
    %83 = vmatprep.subr.mxu0 0.0
    %84 = vmatpush1.msra.mxu0 0.0
    %85 = vmatprep.subr.mxu0 0.0
    %86 = vmatpush1.msra.mxu0 0.0
    %87 = vmatprep.subr.mxu0 0.0
    %88 = vmatpush1.msra.mxu0 0.0
    %89 = vmatprep.subr.mxu0 0.0
    %90 = vmatpush1.msra.mxu0 0.0
    %91 = vmatprep.subr.mxu0 0.0
    %92 = vmatpush1.msra.mxu0 0.0
    %93 = vmatprep.subr.mxu0 0.0
    %94 = vmatpush1.msra.mxu0 0.0
    %95 = vmatprep.subr.mxu0 0.0
    %96 = vmatpush1.msra.mxu0 0.0
    %97 = vmatprep.subr.mxu0 0.0
    %98 = vmatpush1.msra.mxu0 0.0
    %99 = vmatprep.subr.mxu0 0.0
    %100 = vmatpush1.msra.mxu0 0.0
    %101 = vmatprep.subr.mxu0 0.0
    %102 = vmatpush1.msra.mxu0 0.0
    %103 = vmatprep.subr.mxu0 0.0
    %104 = vmatpush1.msra.mxu0 0.0
    %105 = vmatprep.subr.mxu0 0.0
    %106 = vmatpush1.msra.mxu0 0.0
    %107 = vmatprep.subr.mxu0 0.0
    %108 = vmatpush1.msra.mxu0 0.0
    %109 = vmatprep.subr.mxu0 0.0
    %110 = vmatpush1.msra.mxu0 0.0
    %111 = vmatprep.subr.mxu0 0.0
    %112 = vmatpush1.msra.mxu0 0.0
    %113 = vmatprep.subr.mxu0 0.0
    %114 = vmatpush1.msra.mxu0 0.0
    %115 = vmatprep.subr.mxu0 0.0
    %116 = vmatpush1.msra.mxu0 0.0
    %117 = vmatprep.subr.mxu0 0.0
    %118 = vmatpush1.msra.mxu0 0.0
    %119 = vmatprep.subr.mxu0 0.0
    %120 = vmatpush1.msra.mxu0 0.0
    %121 = vmatprep.subr.mxu0 0.0
    %122 = vmatpush1.msra.mxu0 0.0
    %123 = vmatprep.subr.mxu0 0.0
    %124 = vmatpush1.msra.mxu0 0.0
    %125 = vmatprep.subr.mxu0 0.0
    %126 = vmatpush1.msra.mxu0 0.0
    %127 = vmatprep.subr.mxu0 0.0
    %128 = vmatpush1.msra.mxu0 0.0
    %129 = vmatprep.subr.mxu0 0.0
    %130 = vmatpush1.msra.mxu0 0.0
    %131 = vmatprep.subr.mxu0 0.0
    %132 = vmatpush1.msra.mxu0 0.0
    %133 = vmatprep.subr.mxu0 0.0
    %134 = vmatpush1.msra.mxu0 0.0
    %135 = vmatprep.subr.mxu0 0.0
    %136 = vmatpush1.msra.mxu0 0.0
    %137 = vmatprep.subr.mxu0 0.0
    %138 = vmatpush1.msra.mxu0 0.0
    %139 = vmatprep.subr.mxu0 0.0
    %140 = vmatpush1.msra.mxu0 0.0
    %141 = vmatprep.mubr.f32.mxu0 0.0
    %142 = vmatmul.mubr.f32.gmra.mrb[0].mxu0 %v75
    %v143 = vpop.f32.mrb[0].mxu0
    %v144 = vadd.f32 0.0, %v143
    %v145 = vpop.f32.mrb[0].mxu0
    %146 = vdwg.mxu0
    %v147 = vld [vmem:[%s2] sm:$0xf]
    %vm148 = vcmask 261120
    %v150 = vsel %vm148, %v147, 0
    %152 = vmatprep.subr.mxu0 0.0
    %153 = vmatpush1.msra.mxu0 %v68
    %154 = vmatprep.subr.mxu0 0.0
    %155 = vmatpush1.msra.mxu0 %v69
    %156 = vmatprep.subr.mxu0 0.0
    %157 = vmatpush1.msra.mxu0 %v70
    %158 = vmatprep.subr.mxu0 0.0
    %159 = vmatpush1.msra.mxu0 %v71
    %160 = vmatprep.subr.mxu0 0.0
    %161 = vmatpush1.msra.mxu0 0.0
    %162 = vmatprep.subr.mxu0 0.0
    %163 = vmatpush1.msra.mxu0 0.0
    %164 = vmatprep.subr.mxu0 0.0
    %165 = vmatpush1.msra.mxu0 0.0
    %166 = vmatprep.subr.mxu0 0.0
    %167 = vmatpush1.msra.mxu0 0.0
    %168 = vmatprep.subr.mxu0 0.0
    %169 = vmatpush1.msra.mxu0 0.0
    %170 = vmatprep.subr.mxu0 0.0
    %171 = vmatpush1.msra.mxu0 0.0
    %172 = vmatprep.subr.mxu0 0.0
    %173 = vmatpush1.msra.mxu0 0.0
    %174 = vmatprep.subr.mxu0 0.0
    %175 = vmatpush1.msra.mxu0 0.0
    %176 = vmatprep.subr.mxu0 0.0
    %177 = vmatpush1.msra.mxu0 0.0
    %178 = vmatprep.subr.mxu0 0.0
    %179 = vmatpush1.msra.mxu0 0.0
    %180 = vmatprep.subr.mxu0 0.0
    %181 = vmatpush1.msra.mxu0 0.0
    %182 = vmatprep.subr.mxu0 0.0
    %183 = vmatpush1.msra.mxu0 0.0
    %184 = vmatprep.subr.mxu0 0.0
    %185 = vmatpush1.msra.mxu0 0.0
    %186 = vmatprep.subr.mxu0 0.0
    %187 = vmatpush1.msra.mxu0 0.0
    %188 = vmatprep.subr.mxu0 0.0
    %189 = vmatpush1.msra.mxu0 0.0
    %190 = vmatprep.subr.mxu0 0.0
    %191 = vmatpush1.msra.mxu0 0.0
    %192 = vmatprep.subr.mxu0 0.0
    %193 = vmatpush1.msra.mxu0 0.0
    %194 = vmatprep.subr.mxu0 0.0
    %195 = vmatpush1.msra.mxu0 0.0
    %196 = vmatprep.subr.mxu0 0.0
    %197 = vmatpush1.msra.mxu0 0.0
    %198 = vmatprep.subr.mxu0 0.0
    %199 = vmatpush1.msra.mxu0 0.0
    %200 = vmatprep.subr.mxu0 0.0
    %201 = vmatpush1.msra.mxu0 0.0
    %202 = vmatprep.subr.mxu0 0.0
    %203 = vmatpush1.msra.mxu0 0.0
    %204 = vmatprep.subr.mxu0 0.0
    %205 = vmatpush1.msra.mxu0 0.0
    %206 = vmatprep.subr.mxu0 0.0
    %207 = vmatpush1.msra.mxu0 0.0
    %208 = vmatprep.subr.mxu0 0.0
    %209 = vmatpush1.msra.mxu0 0.0
    %210 = vmatprep.subr.mxu0 0.0
    %211 = vmatpush1.msra.mxu0 0.0
    %212 = vmatprep.subr.mxu0 0.0
    %213 = vmatpush1.msra.mxu0 0.0
    %214 = vmatprep.subr.mxu0 0.0
    %215 = vmatpush1.msra.mxu0 0.0
    %216 = vmatprep.mubr.f32.mxu0 0.0
    %217 = vmatmul.mubr.f32.gmra.mrb[0].mxu0 %v150
    %v218 = vpop.f32.mrb[0].mxu0
    %v219 = vadd.f32 0.0, %v218
    %v220 = vpop.f32.mrb[0].mxu0
    %221 = vdwg.mxu0
    %v222 = vmul.f32 %v144, %v219
    %vm223 = vcmask 1043456
    %v224 = vsel %vm223, %v222, 0.0
    %v225 = vrot.slane %v224, 4
    %v226 = vadd.f32 %v224, %v225
    %v227 = vrot.slane %v226, 2
    %v228 = vadd.f32 %v226, %v227
    %v229 = vrot.slane %v228, 1
    %v230 = vadd.f32 %v228, %v229
    %v231 = vsub.f32 0.0, %v230
    %v232 = vmul.f32 %v231, 1.442695
    %v233 = vpow.pop %v232
    %v234 = vadd.f32 %v233, 1.0
    %v235 = vrcp.pop %v234
    %236 = vst [vmem:[#allocation7] sm:$0x1] %v235
    // Predicated region
    $region22: #{tpu_custom_call.1} parent=1 // pred_check
      _
    $region23: #{tpu_custom_call.1} parent=1 // pred_check_branch
      %238 = sbr.rel (0) target = $region25
    $region24: #{tpu_custom_call.1} parent=1 // pred_region
      %s240 = ssub.s32 16, 16
      %241 = vsyncadd [#allocation4], %s240
      %s243 = sshll.u32 [#allocation7], 4
      %s244 = int_to_ptr.vmem [resolvable:$true] %s243
      %246 = dma.vmem_to_hbm [thread:$0]  %s244, 16, %s3, [#allocation4]
    $region25: #{tpu_custom_call.1} parent=1 // pred_fallthru
      _
    // Predicated region
    $region26: #{tpu_custom_call.1} parent=1 // pred_check
      _
    $region27: #{tpu_custom_call.1} parent=1 // pred_check_branch
      %248 = sbr.rel (0) target = $region29
    $region28: #{tpu_custom_call.1} parent=1 // pred_region
      %249 = dma.done [#allocation4], 16
    $region29: #{tpu_custom_call.1} parent=1 // pred_fallthru
      _
    %250 = vsyncpa [#allocation3], 1
    %251 = vsyncpa [#allocation6], 1
    %252 = vsyncpa [#allocation4], 1

</llo_original>
